<compile_context>
chip_gen: v6e
topology: v6e:2x2x1
jax: 0.10.0
libtpu: 0.0.40
codegen_flags: <defaults>
</compile_context>

<pallas_src>
import jax
import jax.numpy as jnp
from jax.experimental import pallas as pl
from jax.experimental.pallas import tpu as pltpu

# norse.torch.functional.lif.LIFParameters defaults.
TAU_SYN_INV = 1.0 / 5e-3   # 200.0
TAU_MEM_INV = 1.0 / 1e-2   # 100.0
V_LEAK = 0.0
V_TH = 1.0
V_RESET = 0.0
DT = 1e-3


def _round_up(n, m):
    return ((n + m - 1) // m) * m


def _lif_step(z, v, i):
    """One norse lif_feed_forward_step: injected current `z`, state (v, i).

    Returns (spikes, v_new, i_new).  Shared verbatim by the Pallas kernel body and the
    pure-JAX reference so both run the identical op sequence.
    """
    v_decayed = v + DT * TAU_MEM_INV * ((V_LEAK - v) + i)
    i_decayed = i - DT * TAU_SYN_INV * i
    s = jnp.where(v_decayed - V_TH > 0.0, 1.0, 0.0).astype(z.dtype)
    v_new = (1.0 - s) * v_decayed + s * V_RESET
    i_new = i_decayed + z
    return s, v_new, i_new


def snn_lif_kernel(x_ref, w1_ref, b1_ref, w2_ref, b2_ref, out_ref,
                   v1_ref, i1_ref, v2_ref, i2_ref):
    """One (batch-tile, time-step) grid point of the two-layer LIF pipeline.

    grid = (batch_tiles, T); the time axis is innermost and "arbitrary", and the layer
    states live in VMEM scratch, persisting across the T iterations of a batch tile.
    """
    t = pl.program_id(1)

    @pl.when(t == 0)
    def _init_state():                      # fresh zero LIFState per batch tile
        v1_ref[...] = jnp.zeros_like(v1_ref)
        i1_ref[...] = jnp.zeros_like(i1_ref)
        v2_ref[...] = jnp.zeros_like(v2_ref)
        i2_ref[...] = jnp.zeros_like(i2_ref)

    # fc1: (TB, I) @ (I, H); f32 operands, f32 MXU accumulation.
    z1 = jnp.dot(x_ref[...], w1_ref[...],
                 preferred_element_type=jnp.float32) + b1_ref[...]
    s1, v1_new, i1_new = _lif_step(z1, v1_ref[...], i1_ref[...])
    v1_ref[...] = v1_new
    i1_ref[...] = i1_new

    # fc2: (TB, H) @ (H, O); s1 is already f32 0/1 spikes -> no conversion pass.
    z2 = jnp.dot(s1, w2_ref[...],
                 preferred_element_type=jnp.float32) + b2_ref[...]
    s2, v2_new, i2_new = _lif_step(z2, v2_ref[...], i2_ref[...])
    v2_ref[...] = v2_new
    i2_ref[...] = i2_new

    # The out block is revisited across the time axis, so the value written back to
    # HBM is the last step's spikes (== the module's s2 when T == 1).
    out_ref[...] = s2.astype(out_ref.dtype)


def _pick_batch_tile(batch):
    """Batch rows fed to the MXU per grid step.

    Small B: one full-batch tile (block == full array dim, always layout-legal).
    Large B: 16-row-rounded tiles capped at 256 (v6e/v7x 256x256 MXU) or 128 (v5e
    128x128 MXU).  On v7x (2 TensorCores/chip) prefer >= 2 tiles so the "parallel"
    batch axis can actually feed both cores.
    """
    kind = ""
    try:
        kind = jax.devices()[0].device_kind.lower()
    except Exception:
        pass
    max_tile = 128 if ("v5 lite" in kind or "v5e" in kind) else 256
    if batch <= 16:
        return batch
    if "v7" in kind and batch <= 2 * max_tile:
        tile = max(16, _round_up(pl.cdiv(batch, 2), 16))
    else:
        tile = min(max_tile, _round_up(batch, 16))
    return batch if tile >= batch else tile


def prepare_params(w1, b1, w2, b2):
    """One-time parameter prep (outside the per-call path): torch-layout (out, in)
    weights -> (in, out) so the kernel matmul is row-major; biases as (1, out) rows."""
    return (jnp.asarray(w1, jnp.float32).T,
            jnp.asarray(b1, jnp.float32).reshape(1, -1),
            jnp.asarray(w2, jnp.float32).T,
            jnp.asarray(b2, jnp.float32).reshape(1, -1))


@jax.jit
def snn_lif_steps(x_seq, w1t, b1, w2t, b2):
    """General T-step LIF feed-forward pipeline.

    x_seq: (T, B, input_size).  Returns the layer-2 spikes of the final step, (B, O).
    With T == 1 this is exactly the PyTorch module's forward.
    """
    T, B, I = x_seq.shape
    H = w1t.shape[1]
    O = w2t.shape[1]
    TB = _pick_batch_tile(B)
    grid = (pl.cdiv(B, TB), T)

    return pl.pallas_call(
        snn_lif_kernel,
        out_shape=jax.ShapeDtypeStruct((B, O), x_seq.dtype),
        grid_spec=pltpu.PrefetchScalarGridSpec(
            num_scalar_prefetch=0,
            grid=grid,
            in_specs=[
                # x_t batch tile; the time dim is squeezed out of the kernel view.
                pl.BlockSpec((None, TB, I), lambda b, t: (t, b, 0)),
                # Weights / biases: constant index_map -> VMEM-resident, fetched once.
                pl.BlockSpec((I, H), lambda b, t: (0, 0)),
                pl.BlockSpec((1, H), lambda b, t: (0, 0)),
                pl.BlockSpec((H, O), lambda b, t: (0, 0)),
                pl.BlockSpec((1, O), lambda b, t: (0, 0)),
            ],
            out_specs=pl.BlockSpec((TB, O), lambda b, t: (b, 0)),
            scratch_shapes=[
                pltpu.VMEM((TB, H), jnp.float32),   # v1
                pltpu.VMEM((TB, H), jnp.float32),   # i1
                pltpu.VMEM((TB, O), jnp.float32),   # v2
                pltpu.VMEM((TB, O), jnp.float32),   # i2
            ],
        ),
        compiler_params=pltpu.CompilerParams(
            # Batch tiles are independent (megacore-shardable on v7x); the time axis
            # carries the LIF state and must stay sequential.
            dimension_semantics=("parallel", "arbitrary"),
        ),
    )(x_seq, w1t, b1, w2t, b2)


def snn_feature_extractor(x, w1t, b1, w2t, b2):
    """Exact forward of the PyTorch SNNFeatureExtractor: one LIF step per layer from a
    fresh zero LIFState.  (With norse's post-threshold current injection this is
    provably an all-zero spike map; callers that only ever need this degenerate case
    can skip the kernel launch entirely and return jnp.zeros((B, O), x.dtype).)"""
    return snn_lif_steps(x[jnp.newaxis], w1t, b1, w2t, b2)


def reference_lif_steps(x_seq, w1, b1, w2, b2):
    """Pure-JAX reference of the (generalized) forward; torch-layout (out, in) weights."""
    T, B, _ = x_seq.shape
    H, O = w1.shape[0], w2.shape[0]
    v1 = jnp.zeros((B, H), jnp.float32)
    i1 = jnp.zeros((B, H), jnp.float32)
    v2 = jnp.zeros((B, O), jnp.float32)
    i2 = jnp.zeros((B, O), jnp.float32)
    s2 = jnp.zeros((B, O), jnp.float32)
    for t in range(T):
        z1 = x_seq[t] @ w1.T + b1
        s1, v1, i1 = _lif_step(z1, v1, i1)
        z2 = s1 @ w2.T + b2
        s2, v2, i2 = _lif_step(z2, v2, i2)
    return s2


if __name__ == "__main__":
    key = jax.random.PRNGKey(0)
    k_x, k_xs, k_w1, k_b1, k_w2, k_b2 = jax.random.split(key, 6)

    # Small, lane-aligned sizes: one (16, 128) activation tile per step, 128-wide
    # (lane-dense) hidden/output dims, no padding or masked stores anywhere.
    batch, input_size, hidden_size, output_size = 16, 128, 128, 128
    num_steps = 16

    # Values on an exact binary grid (ints and ints/64) so the matmuls are exact in
    # f32 -> the Pallas kernel and the pure-JAX reference agree bit-for-bit and the
    # 0/1 spike comparison cannot flake on rounding near the v_th = 1.0 threshold.
    def grid_vals(k, shape, scale):
        return jax.random.randint(k, shape, -8, 9).astype(jnp.float32) * scale

    x = grid_vals(k_x, (batch, input_size), 1.0)
    x_seq = grid_vals(k_xs, (num_steps, batch, input_size), 1.0)
    w1 = grid_vals(k_w1, (hidden_size, input_size), 1.0 / 64)   # torch layout (out, in)
    b1 = grid_vals(k_b1, (hidden_size,), 1.0 / 64)
    w2 = grid_vals(k_w2, (output_size, hidden_size), 1.0 / 64)
    b2 = grid_vals(k_b2, (output_size,), 1.0 / 64)

    # One-time parameter prep (transpose to (in, out)) — outside the per-call path.
    params = jax.block_until_ready(prepare_params(w1, b1, w2, b2))

    # 1) Module parity: a single step from zero state (the PyTorch forward).
    out1 = jax.block_until_ready(snn_feature_extractor(x, *params))
    ref1 = reference_lif_steps(x[None], w1, b1, w2, b2)
    assert out1.shape == (batch, output_size), out1.shape
    assert jnp.array_equal(out1, ref1), "single-step mismatch vs. reference"
    assert not jnp.any(out1), "single step from zero state must be spike-free"

    # 2) Live multi-step path (the generalization the kernel is structured for).
    outT = jax.block_until_ready(snn_lif_steps(x_seq, *params))
    refT = reference_lif_steps(x_seq, w1, b1, w2, b2)
    assert outT.shape == (batch, output_size), outT.shape
    assert jnp.array_equal(outT, refT), "multi-step mismatch vs. reference"

    print("KERNEL_OK")
</pallas_src>

<mosaic_0001>
module attributes {stable_mosaic.version = 11 : i64} {
  func.func @snn_lif_kernel(%arg0: i32, %arg1: i32, %arg2: memref<1x16x128xf32, #tpu.memory_space<vmem>>, %arg3: memref<128x128xf32, #tpu.memory_space<vmem>>, %arg4: memref<1x128xf32, #tpu.memory_space<vmem>>, %arg5: memref<128x128xf32, #tpu.memory_space<vmem>>, %arg6: memref<1x128xf32, #tpu.memory_space<vmem>>, %arg7: memref<16x128xf32, #tpu.memory_space<vmem>>, %arg8: memref<16x128xf32, #tpu.memory_space<vmem>>, %arg9: memref<16x128xf32, #tpu.memory_space<vmem>>, %arg10: memref<16x128xf32, #tpu.memory_space<vmem>>, %arg11: memref<16x128xf32, #tpu.memory_space<vmem>>) attributes {dimension_semantics = [#tpu.dimension_semantics<parallel>, #tpu.dimension_semantics<arbitrary>], iteration_bounds = array<i64: 1, 1>, scalar_prefetch = 0 : i64, scratch_operands = 4 : i64, tpu.core_type = #tpu.core_type<tc>, window_params = [{transform_indices = @transform_0, window_bounds = array<i64: 1, 16, 128>}, {pipeline_mode = #tpu.pipeline_mode<synchronous>, transform_indices = @transform_1, window_bounds = array<i64: 128, 128>}, {pipeline_mode = #tpu.pipeline_mode<synchronous>, transform_indices = @transform_2, window_bounds = array<i64: 1, 128>}, {pipeline_mode = #tpu.pipeline_mode<synchronous>, transform_indices = @transform_3, window_bounds = array<i64: 128, 128>}, {pipeline_mode = #tpu.pipeline_mode<synchronous>, transform_indices = @transform_4, window_bounds = array<i64: 1, 128>}, {transform_indices = @transform_5, window_bounds = array<i64: 16, 128>}]} {
    %c0_i32 = arith.constant 0 : i32
    %0 = arith.cmpi eq, %arg1, %c0_i32 : i32
    %1 = arith.extui %0 : i1 to i32
    %c0_i32_0 = arith.constant 0 : i32
    %2 = arith.cmpi ne, %1, %c0_i32_0 : i32
    scf.if %2 {
      %cst_48 = arith.constant 0.000000e+00 : f32
      %70 = vector.broadcast %cst_48 : f32 to vector<16x128xf32>
      %c0_49 = arith.constant 0 : index
      %c0_50 = arith.constant 0 : index
      %71 = vector.load %arg8[%c0_49, %c0_50] : memref<16x128xf32, #tpu.memory_space<vmem>>, vector<16x128xf32>
      tpu.vector_store %arg8[%c0_49, %c0_50], %70 {strides = array<i32>} : memref<16x128xf32, #tpu.memory_space<vmem>>, vector<16x128xf32>,
      %cst_51 = arith.constant 0.000000e+00 : f32
      %72 = vector.broadcast %cst_51 : f32 to vector<16x128xf32>
      %c0_52 = arith.constant 0 : index
      %c0_53 = arith.constant 0 : index
      %73 = vector.load %arg9[%c0_52, %c0_53] : memref<16x128xf32, #tpu.memory_space<vmem>>, vector<16x128xf32>
      tpu.vector_store %arg9[%c0_52, %c0_53], %72 {strides = array<i32>} : memref<16x128xf32, #tpu.memory_space<vmem>>, vector<16x128xf32>,
      %cst_54 = arith.constant 0.000000e+00 : f32
      %74 = vector.broadcast %cst_54 : f32 to vector<16x128xf32>
      %c0_55 = arith.constant 0 : index
      %c0_56 = arith.constant 0 : index
      %75 = vector.load %arg10[%c0_55, %c0_56] : memref<16x128xf32, #tpu.memory_space<vmem>>, vector<16x128xf32>
      tpu.vector_store %arg10[%c0_55, %c0_56], %74 {strides = array<i32>} : memref<16x128xf32, #tpu.memory_space<vmem>>, vector<16x128xf32>,
      %cst_57 = arith.constant 0.000000e+00 : f32
      %76 = vector.broadcast %cst_57 : f32 to vector<16x128xf32>
      %c0_58 = arith.constant 0 : index
      %c0_59 = arith.constant 0 : index
      %77 = vector.load %arg11[%c0_58, %c0_59] : memref<16x128xf32, #tpu.memory_space<vmem>>, vector<16x128xf32>
      tpu.vector_store %arg11[%c0_58, %c0_59], %76 {strides = array<i32>} : memref<16x128xf32, #tpu.memory_space<vmem>>, vector<16x128xf32>,
    } else {
    }
    %c0 = arith.constant 0 : index
    %c0_1 = arith.constant 0 : index
    %c0_2 = arith.constant 0 : index
    %3 = vector.load %arg2[%c0, %c0_1, %c0_2] : memref<1x16x128xf32, #tpu.memory_space<vmem>>, vector<1x16x128xf32>
    %4 = vector.shape_cast %3 : vector<1x16x128xf32> to vector<16x128xf32>
    %c0_3 = arith.constant 0 : index
    %c0_4 = arith.constant 0 : index
    %5 = vector.load %arg3[%c0_3, %c0_4] : memref<128x128xf32, #tpu.memory_space<vmem>>, vector<128x128xf32>
    %cst = arith.constant dense<0.000000e+00> : vector<16x128xf32>
    %6 = tpu.matmul %4, %5, %cst {dimension_numbers = #tpu.dot_dimension_numbers<[1], [0], [0], [1], [0, 0, 1, 1], [], []>} : vector<16x128xf32>, vector<128x128xf32>, vector<16x128xf32> -> vector<16x128xf32>
    %c0_5 = arith.constant 0 : index
    %c0_6 = arith.constant 0 : index
    %7 = vector.load %arg4[%c0_5, %c0_6] : memref<1x128xf32, #tpu.memory_space<vmem>>, vector<1x128xf32>
    %8 = vector.broadcast %7 : vector<1x128xf32> to vector<16x128xf32>
    %9 = arith.addf %6, %8 : vector<16x128xf32>
    %c0_7 = arith.constant 0 : index
    %c0_8 = arith.constant 0 : index
    %10 = vector.load %arg8[%c0_7, %c0_8] : memref<16x128xf32, #tpu.memory_space<vmem>>, vector<16x128xf32>
    %c0_9 = arith.constant 0 : index
    %c0_10 = arith.constant 0 : index
    %11 = vector.load %arg9[%c0_9, %c0_10] : memref<16x128xf32, #tpu.memory_space<vmem>>, vector<16x128xf32>
    %cst_11 = arith.constant 0.000000e+00 : f32
    %12 = vector.broadcast %cst_11 : f32 to vector<16x128xf32>
    %13 = arith.subf %12, %10 : vector<16x128xf32>
    %14 = arith.addf %13, %11 : vector<16x128xf32>
    %cst_12 = arith.constant 1.000000e-01 : f32
    %15 = vector.broadcast %cst_12 : f32 to vector<16x128xf32>
    %16 = arith.mulf %15, %14 : vector<16x128xf32>
    %17 = arith.addf %10, %16 : vector<16x128xf32>
    %cst_13 = arith.constant 2.000000e-01 : f32
    %18 = vector.broadcast %cst_13 : f32 to vector<16x128xf32>
    %19 = arith.mulf %18, %11 : vector<16x128xf32>
    %20 = arith.subf %11, %19 : vector<16x128xf32>
    %cst_14 = arith.constant 1.000000e+00 : f32
    %21 = vector.broadcast %cst_14 : f32 to vector<16x128xf32>
    %22 = arith.subf %17, %21 : vector<16x128xf32>
    %cst_15 = arith.constant 0.000000e+00 : f32
    %23 = vector.broadcast %cst_15 : f32 to vector<16x128xf32>
    %24 = arith.cmpf ogt, %22, %23 : vector<16x128xf32>
    %cst_16 = arith.constant 1.000000e+00 : f32
    %cst_17 = arith.constant 0.000000e+00 : f32
    %25 = vector.broadcast %cst_16 : f32 to vector<16x128xf32>
    %26 = vector.broadcast %cst_17 : f32 to vector<16x128xf32>
    %27 = arith.select %24, %25, %26 : vector<16x128xi1>, vector<16x128xf32>
    %cst_18 = arith.constant 1.000000e+00 : f32
    %28 = vector.broadcast %cst_18 : f32 to vector<16x128xf32>
    %29 = arith.subf %28, %27 : vector<16x128xf32>
    %30 = arith.mulf %29, %17 : vector<16x128xf32>
    %cst_19 = arith.constant 0.000000e+00 : f32
    %31 = vector.broadcast %cst_19 : f32 to vector<16x128xf32>
    %32 = arith.mulf %27, %31 : vector<16x128xf32>
    %33 = arith.addf %30, %32 : vector<16x128xf32>
    %34 = arith.addf %20, %9 : vector<16x128xf32>
    %c0_20 = arith.constant 0 : index
    %c0_21 = arith.constant 0 : index
    %35 = vector.load %arg8[%c0_20, %c0_21] : memref<16x128xf32, #tpu.memory_space<vmem>>, vector<16x128xf32>
    tpu.vector_store %arg8[%c0_20, %c0_21], %33 {strides = array<i32>} : memref<16x128xf32, #tpu.memory_space<vmem>>, vector<16x128xf32>,
    %c0_22 = arith.constant 0 : index
    %c0_23 = arith.constant 0 : index
    %36 = vector.load %arg9[%c0_22, %c0_23] : memref<16x128xf32, #tpu.memory_space<vmem>>, vector<16x128xf32>
    tpu.vector_store %arg9[%c0_22, %c0_23], %34 {strides = array<i32>} : memref<16x128xf32, #tpu.memory_space<vmem>>, vector<16x128xf32>,
    %c0_24 = arith.constant 0 : index
    %c0_25 = arith.constant 0 : index
    %37 = vector.load %arg5[%c0_24, %c0_25] : memref<128x128xf32, #tpu.memory_space<vmem>>, vector<128x128xf32>
    %cst_26 = arith.constant dense<0.000000e+00> : vector<16x128xf32>
    %38 = tpu.matmul %27, %37, %cst_26 {dimension_numbers = #tpu.dot_dimension_numbers<[1], [0], [0], [1], [0, 0, 1, 1], [], []>} : vector<16x128xf32>, vector<128x128xf32>, vector<16x128xf32> -> vector<16x128xf32>
    %c0_27 = arith.constant 0 : index
    %c0_28 = arith.constant 0 : index
    %39 = vector.load %arg6[%c0_27, %c0_28] : memref<1x128xf32, #tpu.memory_space<vmem>>, vector<1x128xf32>
    %40 = vector.broadcast %39 : vector<1x128xf32> to vector<16x128xf32>
    %41 = arith.addf %38, %40 : vector<16x128xf32>
    %c0_29 = arith.constant 0 : index
    %c0_30 = arith.constant 0 : index
    %42 = vector.load %arg10[%c0_29, %c0_30] : memref<16x128xf32, #tpu.memory_space<vmem>>, vector<16x128xf32>
    %c0_31 = arith.constant 0 : index
    %c0_32 = arith.constant 0 : index
    %43 = vector.load %arg11[%c0_31, %c0_32] : memref<16x128xf32, #tpu.memory_space<vmem>>, vector<16x128xf32>
    %cst_33 = arith.constant 0.000000e+00 : f32
    %44 = vector.broadcast %cst_33 : f32 to vector<16x128xf32>
    %45 = arith.subf %44, %42 : vector<16x128xf32>
    %46 = arith.addf %45, %43 : vector<16x128xf32>
    %cst_34 = arith.constant 1.000000e-01 : f32
    %47 = vector.broadcast %cst_34 : f32 to vector<16x128xf32>
    %48 = arith.mulf %47, %46 : vector<16x128xf32>
    %49 = arith.addf %42, %48 : vector<16x128xf32>
    %cst_35 = arith.constant 2.000000e-01 : f32
    %50 = vector.broadcast %cst_35 : f32 to vector<16x128xf32>
    %51 = arith.mulf %50, %43 : vector<16x128xf32>
    %52 = arith.subf %43, %51 : vector<16x128xf32>
    %cst_36 = arith.constant 1.000000e+00 : f32
    %53 = vector.broadcast %cst_36 : f32 to vector<16x128xf32>
    %54 = arith.subf %49, %53 : vector<16x128xf32>
    %cst_37 = arith.constant 0.000000e+00 : f32
    %55 = vector.broadcast %cst_37 : f32 to vector<16x128xf32>
    %56 = arith.cmpf ogt, %54, %55 : vector<16x128xf32>
    %cst_38 = arith.constant 1.000000e+00 : f32
    %cst_39 = arith.constant 0.000000e+00 : f32
    %57 = vector.broadcast %cst_38 : f32 to vector<16x128xf32>
    %58 = vector.broadcast %cst_39 : f32 to vector<16x128xf32>
    %59 = arith.select %56, %57, %58 : vector<16x128xi1>, vector<16x128xf32>
    %cst_40 = arith.constant 1.000000e+00 : f32
    %60 = vector.broadcast %cst_40 : f32 to vector<16x128xf32>
    %61 = arith.subf %60, %59 : vector<16x128xf32>
    %62 = arith.mulf %61, %49 : vector<16x128xf32>
    %cst_41 = arith.constant 0.000000e+00 : f32
    %63 = vector.broadcast %cst_41 : f32 to vector<16x128xf32>
    %64 = arith.mulf %59, %63 : vector<16x128xf32>
    %65 = arith.addf %62, %64 : vector<16x128xf32>
    %66 = arith.addf %52, %41 : vector<16x128xf32>
    %c0_42 = arith.constant 0 : index
    %c0_43 = arith.constant 0 : index
    %67 = vector.load %arg10[%c0_42, %c0_43] : memref<16x128xf32, #tpu.memory_space<vmem>>, vector<16x128xf32>
    tpu.vector_store %arg10[%c0_42, %c0_43], %65 {strides = array<i32>} : memref<16x128xf32, #tpu.memory_space<vmem>>, vector<16x128xf32>,
    %c0_44 = arith.constant 0 : index
    %c0_45 = arith.constant 0 : index
    %68 = vector.load %arg11[%c0_44, %c0_45] : memref<16x128xf32, #tpu.memory_space<vmem>>, vector<16x128xf32>
    tpu.vector_store %arg11[%c0_44, %c0_45], %66 {strides = array<i32>} : memref<16x128xf32, #tpu.memory_space<vmem>>, vector<16x128xf32>,
    %c0_46 = arith.constant 0 : index
    %c0_47 = arith.constant 0 : index
    %69 = vector.load %arg7[%c0_46, %c0_47] : memref<16x128xf32, #tpu.memory_space<vmem>>, vector<16x128xf32>
    tpu.vector_store %arg7[%c0_46, %c0_47], %59 {strides = array<i32>} : memref<16x128xf32, #tpu.memory_space<vmem>>, vector<16x128xf32>,
    return
  }
  func.func @transform_0(%arg0: i32, %arg1: i32) -> (i32, i32, i32) {
    %c0_i32 = arith.constant 0 : i32
    %c0_i32_0 = arith.constant 0 : i32
    return %arg1, %arg0, %c0_i32 : i32, i32, i32
  }
  func.func @transform_1(%arg0: i32, %arg1: i32) -> (i32, i32) {
    %c0_i32 = arith.constant 0 : i32
    %c0_i32_0 = arith.constant 0 : i32
    %c0_i32_1 = arith.constant 0 : i32
    return %c0_i32, %c0_i32_0 : i32, i32
  }
  func.func @transform_2(%arg0: i32, %arg1: i32) -> (i32, i32) {
    %c0_i32 = arith.constant 0 : i32
    %c0_i32_0 = arith.constant 0 : i32
    %c0_i32_1 = arith.constant 0 : i32
    return %c0_i32, %c0_i32_0 : i32, i32
  }
  func.func @transform_3(%arg0: i32, %arg1: i32) -> (i32, i32) {
    %c0_i32 = arith.constant 0 : i32
    %c0_i32_0 = arith.constant 0 : i32
    %c0_i32_1 = arith.constant 0 : i32
    return %c0_i32, %c0_i32_0 : i32, i32
  }
  func.func @transform_4(%arg0: i32, %arg1: i32) -> (i32, i32) {
    %c0_i32 = arith.constant 0 : i32
    %c0_i32_0 = arith.constant 0 : i32
    %c0_i32_1 = arith.constant 0 : i32
    return %c0_i32, %c0_i32_0 : i32, i32
  }
  func.func @transform_5(%arg0: i32, %arg1: i32) -> (i32, i32) {
    %c0_i32 = arith.constant 0 : i32
    %c0_i32_0 = arith.constant 0 : i32
    return %arg0, %c0_i32 : i32, i32
  }
}

</mosaic_0001>

<llo_original>
// kernel: snn_lif_steps.1
$region0: #{snn_lif_steps.1}
  #allocation0 [shape = 'u32[]', space=smem, size = 0x4, offset = 0x4, fixed_abs, tag = 'smem constant byte address 0x4 - core index']
  #allocation1 [shape = 'u32[144,128]{1,0:T(1,128)}', space=vmem, size = 0x12000, scoped, tag = 'internal scratch']
  #allocation2 [shape = 'f32[16,128]{1,0:T(8,128)}', space=vmem, size = 0x2000, scoped, tag = 'scratch operand']
  #allocation3 [shape = 'f32[16,128]{1,0:T(8,128)}', space=vmem, size = 0x2000, scoped, tag = 'scratch operand']
  #allocation4 [shape = 'f32[16,128]{1,0:T(8,128)}', space=vmem, size = 0x2000, scoped, tag = 'scratch operand']
  #allocation5 [shape = 'f32[16,128]{1,0:T(8,128)}', space=vmem, size = 0x2000, scoped, tag = 'scratch operand']
  %s0 = inlined_call_operand.hbm [shape: f32[1,16,128], index: 0, kind: input, shape index: {}]
  %s1 = inlined_call_operand.hbm [shape: f32[128,128], index: 1, kind: input, shape index: {}]
  %s2 = inlined_call_operand.vmem [shape: f32[1,128], index: 2, kind: input, shape index: {}]
  %s3 = inlined_call_operand.hbm [shape: f32[128,128], index: 3, kind: input, shape index: {}]
  %s4 = inlined_call_operand.vmem [shape: f32[1,128], index: 4, kind: input, shape index: {}]
  %s5 = inlined_call_operand.hbm [shape: f32[16,128], index: 5, kind: output, shape index: {}]
  %s6 = sld [smem:[#allocation0]]
  $region46: #{snn_lif_steps.1} parent=0
    _
  %s8 = ssub.s32 1, %s6
  %s9 = scalar_select 0, %s8, %s6
  $region1: #{snn_lif_steps.1} parent=0
    #allocation6 [shape = 'u8[8192]{0}', space=vmem, size = 0x2000, scoped, tag = 'input window, operand 0, single buffered']
    #allocation7 [shape = 's32[1]{0}', space=sflag, size = 0x4, scoped, tag = 'scoped memory for snn_lif_steps.1']
    #allocation8 [shape = 's32[1]{0}', space=sflag, size = 0x4, scoped, tag = 'scoped memory for snn_lif_steps.1']
    #allocation9 [shape = 'u8[65536]{0}', space=vmem, size = 0x10000, scoped, tag = 'input window, operand 1, single buffered']
    #allocation10 [shape = 's32[1]{0}', space=sflag, size = 0x4, scoped, tag = 'scoped memory for snn_lif_steps.1']
    #allocation11 [shape = 'u8[65536]{0}', space=vmem, size = 0x10000, scoped, tag = 'input window, operand 3, single buffered']
    #allocation12 [shape = 'u8[8192]{0}', space=vmem, size = 0x2000, scoped, tag = 'output window, operand 0, single buffered']
    %10 = vsyncpa [#allocation7], 0
    %11 = vsyncpa [#allocation10], 0
    %12 = vsyncpa [#allocation8], 0
    // Predicated region
    $region2: #{snn_lif_steps.1} parent=1 // pred_check
      _
    $region3: #{snn_lif_steps.1} parent=1 // pred_check_branch
      %14 = sbr.rel (0) target = $region5
    $region4: #{snn_lif_steps.1} parent=1 // pred_region
      %s16 = ssub.s32 256, 256
      %17 = vsyncadd [#allocation7], %s16
      %s18 = sshll.u32 [#allocation6], 4
      %s19 = int_to_ptr.vmem [resolvable:$true] %s18
      %24 = dma.hbm_to_vmem [thread:$0]  %s0, 256, %s19, [#allocation7], 128, 128, 8
    $region5: #{snn_lif_steps.1} parent=1 // pred_fallthru
      _
    // Predicated region
    $region6: #{snn_lif_steps.1} parent=1 // pred_check
      _
    $region7: #{snn_lif_steps.1} parent=1 // pred_check_branch
      %26 = sbr.rel (0) target = $region9
    $region8: #{snn_lif_steps.1} parent=1 // pred_region
      %s28 = ssub.s32 2048, 2048
      %29 = vsyncadd [#allocation10], %s28
      %s30 = sshll.u32 [#allocation9], 4
      %s31 = int_to_ptr.vmem [resolvable:$true] %s30
      %36 = dma.hbm_to_vmem [thread:$0]  %s1, 2048, %s31, [#allocation10], 128, 128, 8
    $region9: #{snn_lif_steps.1} parent=1 // pred_fallthru
      _
    // Predicated region
    $region10: #{snn_lif_steps.1} parent=1 // pred_check
      _
    $region11: #{snn_lif_steps.1} parent=1 // pred_check_branch
      %38 = sbr.rel (0) target = $region13
    $region12: #{snn_lif_steps.1} parent=1 // pred_region
      _
    $region13: #{snn_lif_steps.1} parent=1 // pred_fallthru
      _
    // Predicated region
    $region14: #{snn_lif_steps.1} parent=1 // pred_check
      _
    $region15: #{snn_lif_steps.1} parent=1 // pred_check_branch
      %40 = sbr.rel (0) target = $region17
    $region16: #{snn_lif_steps.1} parent=1 // pred_region
      %s42 = ssub.s32 2048, 2048
      %43 = vsyncadd [#allocation10], %s42
      %s44 = sshll.u32 [#allocation11], 4
      %s45 = int_to_ptr.vmem [resolvable:$true] %s44
      %50 = dma.hbm_to_vmem [thread:$0]  %s3, 2048, %s45, [#allocation10], 128, 128, 8
    $region17: #{snn_lif_steps.1} parent=1 // pred_fallthru
      _
    // Predicated region
    $region18: #{snn_lif_steps.1} parent=1 // pred_check
      _
    $region19: #{snn_lif_steps.1} parent=1 // pred_check_branch
      %52 = sbr.rel (0) target = $region21
    $region20: #{snn_lif_steps.1} parent=1 // pred_region
      _
    $region21: #{snn_lif_steps.1} parent=1 // pred_fallthru
      _
    // Predicated region
    $region22: #{snn_lif_steps.1} parent=1 // pred_check
      _
    $region23: #{snn_lif_steps.1} parent=1 // pred_check_branch
      %54 = sbr.rel (0) target = $region25
    $region24: #{snn_lif_steps.1} parent=1 // pred_region
      %55 = dma.done [#allocation7], 256
    $region25: #{snn_lif_steps.1} parent=1 // pred_fallthru
      _
    // Predicated region
    $region26: #{snn_lif_steps.1} parent=1 // pred_check
      _
    $region27: #{snn_lif_steps.1} parent=1 // pred_check_branch
      %57 = sbr.rel (0) target = $region29
    $region28: #{snn_lif_steps.1} parent=1 // pred_region
      %58 = dma.done [#allocation10], 2048
    $region29: #{snn_lif_steps.1} parent=1 // pred_fallthru
      _
    // Predicated region
    $region30: #{snn_lif_steps.1} parent=1 // pred_check
      _
    $region31: #{snn_lif_steps.1} parent=1 // pred_check_branch
      %60 = sbr.rel (0) target = $region33
    $region32: #{snn_lif_steps.1} parent=1 // pred_region
      %61 = dma.done [#allocation10], 2048
    $region33: #{snn_lif_steps.1} parent=1 // pred_fallthru
      _
    %p62 = scmp.eq.s32.totalorder 0, 0
    // Predicated region
    $region34: #{snn_lif_steps.1} parent=1 // pred_check
      %p63 = pneg %p62
    $region35: #{snn_lif_steps.1} parent=1 // pred_check_branch
      %65 = sbr.rel (%p63) target = $region37
    $region36: #{snn_lif_steps.1} parent=1 // pred_region
      %66 = vst [vmem:[#allocation2] sm:$0xff] 0.0
      %67 = vst [vmem:[#allocation2 + $0x8] sm:$0xff] 0.0
      %68 = vst [vmem:[#allocation3] sm:$0xff] 0.0
      %69 = vst [vmem:[#allocation3 + $0x8] sm:$0xff] 0.0
      %70 = vst [vmem:[#allocation4] sm:$0xff] 0.0
      %71 = vst [vmem:[#allocation4 + $0x8] sm:$0xff] 0.0
      %72 = vst [vmem:[#allocation5] sm:$0xff] 0.0
      %73 = vst [vmem:[#allocation5 + $0x8] sm:$0xff] 0.0
    $region37: #{snn_lif_steps.1} parent=1 // pred_fallthru
      _
    %v74 = vld [vmem:[#allocation6] sm:$0xff]
    %v75 = vld [vmem:[#allocation6 + $0x8] sm:$0xff]
    %v76 = vld [vmem:[#allocation9] sm:$0xff]
    %v77 = vld [vmem:[#allocation9 + $0x8] sm:$0xff]
    %v78 = vld [vmem:[#allocation9 + $0x10] sm:$0xff]
    %v79 = vld [vmem:[#allocation9 + $0x18] sm:$0xff]
    %v80 = vld [vmem:[#allocation9 + $0x20] sm:$0xff]
    %v81 = vld [vmem:[#allocation9 + $0x28] sm:$0xff]
    %v82 = vld [vmem:[#allocation9 + $0x30] sm:$0xff]
    %v83 = vld [vmem:[#allocation9 + $0x38] sm:$0xff]
    %v84 = vld [vmem:[#allocation9 + $0x40] sm:$0xff]
    %v85 = vld [vmem:[#allocation9 + $0x48] sm:$0xff]
    %v86 = vld [vmem:[#allocation9 + $0x50] sm:$0xff]
    %v87 = vld [vmem:[#allocation9 + $0x58] sm:$0xff]
    %v88 = vld [vmem:[#allocation9 + $0x60] sm:$0xff]
    %v89 = vld [vmem:[#allocation9 + $0x68] sm:$0xff]
    %v90 = vld [vmem:[#allocation9 + $0x70] sm:$0xff]
    %v91 = vld [vmem:[#allocation9 + $0x78] sm:$0xff]
    %v92 = vld [vmem:[%s2] sm:$0x1]
    %v94 = vlaneseq
    %v95 = vshrl.u32 %v94, 7
    %v96 = vsub.s32 0, %v95
    %v97 = vrot.slane %v92, %v96
    %99 = vmatprep.subr.mxu0 0.0
    %100 = vmatpush1.msra.mxu0 %v91
    %101 = vmatprep.subr.mxu0 0.0
    %102 = vmatpush1.msra.mxu0 %v90
    %103 = vmatprep.subr.mxu0 0.0
    %104 = vmatpush1.msra.mxu0 %v89
    %105 = vmatprep.subr.mxu0 0.0
    %106 = vmatpush1.msra.mxu0 %v88
    %107 = vmatprep.subr.mxu0 0.0
    %108 = vmatpush1.msra.mxu0 %v87
    %109 = vmatprep.subr.mxu0 0.0
    %110 = vmatpush1.msra.mxu0 %v86
    %111 = vmatprep.subr.mxu0 0.0
    %112 = vmatpush1.msra.mxu0 %v85
    %113 = vmatprep.subr.mxu0 0.0
    %114 = vmatpush1.msra.mxu0 %v84
    %115 = vmatprep.subr.mxu0 0.0
    %116 = vmatpush1.msra.mxu0 %v83
    %117 = vmatprep.subr.mxu0 0.0
    %118 = vmatpush1.msra.mxu0 %v82
    %119 = vmatprep.subr.mxu0 0.0
    %120 = vmatpush1.msra.mxu0 %v81
    %121 = vmatprep.subr.mxu0 0.0
    %122 = vmatpush1.msra.mxu0 %v80
    %123 = vmatprep.subr.mxu0 0.0
    %124 = vmatpush1.msra.mxu0 %v79
    %125 = vmatprep.subr.mxu0 0.0
    %126 = vmatpush1.msra.mxu0 %v78
    %127 = vmatprep.subr.mxu0 0.0
    %128 = vmatpush1.msra.mxu0 %v77
    %129 = vmatprep.subr.mxu0 0.0
    %130 = vmatpush1.msra.mxu0 %v76
    %131 = vmatprep.subr.mxu0 0.0
    %132 = vmatpush2.msra.mxu0 0.0
    %133 = vmatprep.subr.mxu0 0.0
    %134 = vmatpush2.msra.mxu0 0.0
    %135 = vmatprep.subr.mxu0 0.0
    %136 = vmatpush2.msra.mxu0 0.0
    %137 = vmatprep.subr.mxu0 0.0
    %138 = vmatpush2.msra.mxu0 0.0
    %139 = vmatprep.subr.mxu0 0.0
    %140 = vmatpush2.msra.mxu0 0.0
    %141 = vmatprep.subr.mxu0 0.0
    %142 = vmatpush2.msra.mxu0 0.0
    %143 = vmatprep.subr.mxu0 0.0
    %144 = vmatpush2.msra.mxu0 0.0
    %145 = vmatprep.subr.mxu0 0.0
    %146 = vmatpush2.msra.mxu0 0.0
    %147 = vmatprep.subr.mxu0 0.0
    %148 = vmatpush2.msra.mxu0 0.0
    %149 = vmatprep.subr.mxu0 0.0
    %150 = vmatpush2.msra.mxu0 0.0
    %151 = vmatprep.subr.mxu0 0.0
    %152 = vmatpush2.msra.mxu0 0.0
    %153 = vmatprep.subr.mxu0 0.0
    %154 = vmatpush2.msra.mxu0 0.0
    %155 = vmatprep.subr.mxu0 0.0
    %156 = vmatpush2.msra.mxu0 0.0
    %157 = vmatprep.subr.mxu0 0.0
    %158 = vmatpush2.msra.mxu0 0.0
    %159 = vmatprep.subr.mxu0 0.0
    %160 = vmatpush2.msra.mxu0 0.0
    %161 = vmatprep.subr.mxu0 0.0
    %162 = vmatpush2.msra.mxu0 0.0
    %163 = vmatprep.mubr.f32.mxu0 0.0
    %164 = vmatmul.mubr.f32.gmra.mxu0 %v74
    %v165 = vpop.f32.mrf.mxu0
    %v166 = vadd.f32 %v97, %v165
    %v167 = vpop.f32.mrf.mxu0
    %168 = vmatprep.mubr.f32.mxu0 0.0
    %169 = vmatmul.mubr.f32.gmra.mxu0 %v75
    %v170 = vpop.f32.mrf.mxu0
    %v171 = vadd.f32 %v97, %v170
    %v172 = vpop.f32.mrf.mxu0
    %173 = vdwg.mxu0
    %v174 = vld [vmem:[#allocation2] sm:$0xff]
    %v175 = vld [vmem:[#allocation2 + $0x8] sm:$0xff]
    %v176 = vld [vmem:[#allocation3] sm:$0xff]
    %v177 = vld [vmem:[#allocation3 + $0x8] sm:$0xff]
    %v178 = vsub.f32 0.0, %v174
    %v179 = vsub.f32 0.0, %v175
    %v180 = vadd.f32 %v178, %v176
    %v181 = vadd.f32 %v179, %v177
    %v182 = vmul.f32 %v180, 0.1
    %v183 = vmul.f32 %v181, 0.1
    %v184 = vadd.f32 %v174, %v182
    %v185 = vadd.f32 %v175, %v183
    %v186 = vmul.f32 %v176, 0.2
    %v187 = vmul.f32 %v177, 0.2
    %v188 = vsub.f32 %v176, %v186
    %v189 = vsub.f32 %v177, %v187
    %v190 = vsub.f32 %v184, 1.0
    %v191 = vsub.f32 %v185, 1.0
    %vm192 = vcmp.gt.f32.partialorder %v190, 0.0
    %vm193 = vcmp.gt.f32.partialorder %v191, 0.0
    %v194 = vsel %vm192, 1.0, 0.0
    %v195 = vsel %vm193, 1.0, 0.0
    %v196 = vsub.f32 1.0, %v194
    %v197 = vsub.f32 1.0, %v195
    %v198 = vmul.f32 %v196, %v184
    %v199 = vmul.f32 %v197, %v185
    %v200 = vmul.f32 %v194, 0.0
    %v201 = vmul.f32 %v195, 0.0
    %v202 = vadd.f32 %v198, %v200
    %v203 = vadd.f32 %v199, %v201
    %v204 = vadd.f32 %v188, %v166
    %v205 = vadd.f32 %v189, %v171
    %206 = vst [vmem:[#allocation2] sm:$0xff] %v202
    %207 = vst [vmem:[#allocation2 + $0x8] sm:$0xff] %v203
    %208 = vst [vmem:[#allocation3] sm:$0xff] %v204
    %209 = vst [vmem:[#allocation3 + $0x8] sm:$0xff] %v205
    %v210 = vld [vmem:[#allocation11] sm:$0xff]
    %v211 = vld [vmem:[#allocation11 + $0x8] sm:$0xff]
    %v212 = vld [vmem:[#allocation11 + $0x10] sm:$0xff]
    %v213 = vld [vmem:[#allocation11 + $0x18] sm:$0xff]
    %v214 = vld [vmem:[#allocation11 + $0x20] sm:$0xff]
    %v215 = vld [vmem:[#allocation11 + $0x28] sm:$0xff]
    %v216 = vld [vmem:[#allocation11 + $0x30] sm:$0xff]
    %v217 = vld [vmem:[#allocation11 + $0x38] sm:$0xff]
    %v218 = vld [vmem:[#allocation11 + $0x40] sm:$0xff]
    %v219 = vld [vmem:[#allocation11 + $0x48] sm:$0xff]
    %v220 = vld [vmem:[#allocation11 + $0x50] sm:$0xff]
    %v221 = vld [vmem:[#allocation11 + $0x58] sm:$0xff]
    %v222 = vld [vmem:[#allocation11 + $0x60] sm:$0xff]
    %v223 = vld [vmem:[#allocation11 + $0x68] sm:$0xff]
    %v224 = vld [vmem:[#allocation11 + $0x70] sm:$0xff]
    %v225 = vld [vmem:[#allocation11 + $0x78] sm:$0xff]
    %v226 = vld [vmem:[%s4] sm:$0x1]
    %v228 = vlaneseq
    %v229 = vshrl.u32 %v228, 7
    %v230 = vsub.s32 0, %v229
    %v231 = vrot.slane %v226, %v230
    %233 = vmatprep.subr.mxu0 0.0
    %234 = vmatpush1.msra.mxu0 %v225
    %235 = vmatprep.subr.mxu0 0.0
    %236 = vmatpush1.msra.mxu0 %v224
    %237 = vmatprep.subr.mxu0 0.0
    %238 = vmatpush1.msra.mxu0 %v223
    %239 = vmatprep.subr.mxu0 0.0
    %240 = vmatpush1.msra.mxu0 %v222
    %241 = vmatprep.subr.mxu0 0.0
    %242 = vmatpush1.msra.mxu0 %v221
    %243 = vmatprep.subr.mxu0 0.0
    %244 = vmatpush1.msra.mxu0 %v220
    %245 = vmatprep.subr.mxu0 0.0
    %246 = vmatpush1.msra.mxu0 %v219
    %247 = vmatprep.subr.mxu0 0.0
    %248 = vmatpush1.msra.mxu0 %v218
    %249 = vmatprep.subr.mxu0 0.0
    %250 = vmatpush1.msra.mxu0 %v217
    %251 = vmatprep.subr.mxu0 0.0
    %252 = vmatpush1.msra.mxu0 %v216
    %253 = vmatprep.subr.mxu0 0.0
    %254 = vmatpush1.msra.mxu0 %v215
    %255 = vmatprep.subr.mxu0 0.0
    %256 = vmatpush1.msra.mxu0 %v214
    %257 = vmatprep.subr.mxu0 0.0
    %258 = vmatpush1.msra.mxu0 %v213
    %259 = vmatprep.subr.mxu0 0.0
    %260 = vmatpush1.msra.mxu0 %v212
    %261 = vmatprep.subr.mxu0 0.0
    %262 = vmatpush1.msra.mxu0 %v211
    %263 = vmatprep.subr.mxu0 0.0
    %264 = vmatpush1.msra.mxu0 %v210
    %265 = vmatprep.subr.mxu0 0.0
    %266 = vmatpush2.msra.mxu0 0.0
    %267 = vmatprep.subr.mxu0 0.0
    %268 = vmatpush2.msra.mxu0 0.0
    %269 = vmatprep.subr.mxu0 0.0
    %270 = vmatpush2.msra.mxu0 0.0
    %271 = vmatprep.subr.mxu0 0.0
    %272 = vmatpush2.msra.mxu0 0.0
    %273 = vmatprep.subr.mxu0 0.0
    %274 = vmatpush2.msra.mxu0 0.0
    %275 = vmatprep.subr.mxu0 0.0
    %276 = vmatpush2.msra.mxu0 0.0
    %277 = vmatprep.subr.mxu0 0.0
    %278 = vmatpush2.msra.mxu0 0.0
    %279 = vmatprep.subr.mxu0 0.0
    %280 = vmatpush2.msra.mxu0 0.0
    %281 = vmatprep.subr.mxu0 0.0
    %282 = vmatpush2.msra.mxu0 0.0
    %283 = vmatprep.subr.mxu0 0.0
    %284 = vmatpush2.msra.mxu0 0.0
    %285 = vmatprep.subr.mxu0 0.0
    %286 = vmatpush2.msra.mxu0 0.0
    %287 = vmatprep.subr.mxu0 0.0
    %288 = vmatpush2.msra.mxu0 0.0
    %289 = vmatprep.subr.mxu0 0.0
    %290 = vmatpush2.msra.mxu0 0.0
    %291 = vmatprep.subr.mxu0 0.0
    %292 = vmatpush2.msra.mxu0 0.0
    %293 = vmatprep.subr.mxu0 0.0
    %294 = vmatpush2.msra.mxu0 0.0
    %295 = vmatprep.subr.mxu0 0.0
    %296 = vmatpush2.msra.mxu0 0.0
    %297 = vmatprep.mubr.f32.mxu0 0.0
    %298 = vmatmul.mubr.f32.gmra.mxu0 %v194
    %v299 = vpop.f32.mrf.mxu0
    %v300 = vadd.f32 %v231, %v299
    %v301 = vpop.f32.mrf.mxu0
    %302 = vmatprep.mubr.f32.mxu0 0.0
    %303 = vmatmul.mubr.f32.gmra.mxu0 %v195
    %v304 = vpop.f32.mrf.mxu0
    %v305 = vadd.f32 %v231, %v304
    %v306 = vpop.f32.mrf.mxu0
    %307 = vdwg.mxu0
    %v308 = vld [vmem:[#allocation4] sm:$0xff]
    %v309 = vld [vmem:[#allocation4 + $0x8] sm:$0xff]
    %v310 = vld [vmem:[#allocation5] sm:$0xff]
    %v311 = vld [vmem:[#allocation5 + $0x8] sm:$0xff]
    %v312 = vsub.f32 0.0, %v308
    %v313 = vsub.f32 0.0, %v309
    %v314 = vadd.f32 %v312, %v310
    %v315 = vadd.f32 %v313, %v311
    %v316 = vmul.f32 %v314, 0.1
    %v317 = vmul.f32 %v315, 0.1
    %v318 = vadd.f32 %v308, %v316
    %v319 = vadd.f32 %v309, %v317
    %v320 = vmul.f32 %v310, 0.2
    %v321 = vmul.f32 %v311, 0.2
    %v322 = vsub.f32 %v310, %v320
    %v323 = vsub.f32 %v311, %v321
    %v324 = vsub.f32 %v318, 1.0
    %v325 = vsub.f32 %v319, 1.0
    %vm326 = vcmp.gt.f32.partialorder %v324, 0.0
    %vm327 = vcmp.gt.f32.partialorder %v325, 0.0
    %v328 = vsel %vm326, 1.0, 0.0
    %v329 = vsel %vm327, 1.0, 0.0
    %v330 = vsub.f32 1.0, %v328
    %v331 = vsub.f32 1.0, %v329
    %v332 = vmul.f32 %v330, %v318
    %v333 = vmul.f32 %v331, %v319
    %v334 = vmul.f32 %v328, 0.0
    %v335 = vmul.f32 %v329, 0.0
    %v336 = vadd.f32 %v332, %v334
    %v337 = vadd.f32 %v333, %v335
    %v338 = vadd.f32 %v322, %v300
    %v339 = vadd.f32 %v323, %v305
    %340 = vst [vmem:[#allocation4] sm:$0xff] %v336
    %341 = vst [vmem:[#allocation4 + $0x8] sm:$0xff] %v337
    %342 = vst [vmem:[#allocation5] sm:$0xff] %v338
    %343 = vst [vmem:[#allocation5 + $0x8] sm:$0xff] %v339
    %344 = vst [vmem:[#allocation12] sm:$0xff] %v328
    %345 = vst [vmem:[#allocation12 + $0x8] sm:$0xff] %v329
    // Predicated region
    $region38: #{snn_lif_steps.1} parent=1 // pred_check
      _
    $region39: #{snn_lif_steps.1} parent=1 // pred_check_branch
      %347 = sbr.rel (0) target = $region41
    $region40: #{snn_lif_steps.1} parent=1 // pred_region
      %s349 = ssub.s32 256, 256
      %350 = vsyncadd [#allocation8], %s349
      %s351 = sshll.u32 [#allocation12], 4
      %s352 = int_to_ptr.vmem [resolvable:$true] %s351
      %357 = dma.vmem_to_hbm [thread:$0]  %s352, 256, %s5, [#allocation8], 128, 128, 8
    $region41: #{snn_lif_steps.1} parent=1 // pred_fallthru
      _
    // Predicated region
    $region42: #{snn_lif_steps.1} parent=1 // pred_check
      _
    $region43: #{snn_lif_steps.1} parent=1 // pred_check_branch
      %359 = sbr.rel (0) target = $region45
    $region44: #{snn_lif_steps.1} parent=1 // pred_region
      %360 = dma.done [#allocation8], 256
    $region45: #{snn_lif_steps.1} parent=1 // pred_fallthru
      _
    %361 = vsyncpa [#allocation7], 1
    %362 = vsyncpa [#allocation10], 1
    %363 = vsyncpa [#allocation8], 1

</llo_original>
